<compile_context>
chip_gen: v6e
topology: v6e:2x2x1
jax: 0.10.0
libtpu: 0.0.40
codegen_flags: <defaults>
</compile_context>

<pallas_src>
import jax
import jax.numpy as jnp
from jax.experimental import pallas as pl
from jax.experimental.pallas import tpu as pltpu


def _round_up(x, m):
    return ((x + m - 1) // m) * m


def _vmem_capacity_bytes():
    """Physical VMEM of the attached TPU; conservative 64 MiB (v7x) fallback."""
    try:
        return int(pltpu.get_tpu_info().vmem_capacity_bytes)
    except Exception:
        return 64 * 1024 * 1024


def fused_bbox_head_kernel(x_ref, w_ref, b_ref, o_ref):
    """One row-tile of RoIs through both FC heads fused into one wide MXU matmul.

    x_ref : (TILE_N, D)        row tile of flattened RoI features (f32 or bf16)
    w_ref : (D, OUT_PAD)       fused [fc_cls | pad | fc_reg | pad] weight, pre-transposed
    b_ref : (1, OUT_PAD)       fused bias (f32)
    o_ref : (TILE_N, OUT_PAD)  fused, lane-dense output slab (f32)
    """
    acc = jnp.dot(x_ref[...], w_ref[...], preferred_element_type=jnp.float32)
    o_ref[...] = (acc + b_ref[...]).astype(o_ref.dtype)


def prepare_bbox_head_params(wc, bc, wr, br, *, compute_dtype=jnp.float32):
    """One-time weight prep (do NOT redo per forward): transpose both FC weights,
    fuse them along the output dim with EACH head padded to a 128-lane boundary,
    so both wrapper-side splits are aligned slices. Bias stays f32 (f32 epilogue)."""
    n_cls, D = wc.shape          # num_classes + 1
    n_reg = wr.shape[0]          # 4 * num_classes
    cls_pad = max(128, _round_up(n_cls, 128))
    reg_pad = max(128, _round_up(n_reg, 128))
    out_pad = cls_pad + reg_pad

    w_fused = jnp.zeros((D, out_pad), dtype=compute_dtype)
    w_fused = w_fused.at[:, :n_cls].set(wc.T.astype(compute_dtype))
    w_fused = w_fused.at[:, cls_pad:cls_pad + n_reg].set(wr.T.astype(compute_dtype))

    b_fused = jnp.zeros((1, out_pad), dtype=jnp.float32)
    b_fused = b_fused.at[0, :n_cls].set(bc.astype(jnp.float32))
    b_fused = b_fused.at[0, cls_pad:cls_pad + n_reg].set(br.astype(jnp.float32))

    layout = dict(n_cls=n_cls, n_reg=n_reg, cls_pad=cls_pad, out_pad=out_pad)
    return w_fused, b_fused, layout


def bbox_head_forward(x_nchw, w_fused, b_fused, layout, *,
                      tile_n=None, compute_dtype=None, min_kernel_rois=64):
    """x_nchw: (N, C, H, W). Returns (cls_score (N, n_cls), bbox_pred (N, n_reg))."""
    n_cls, n_reg = layout["n_cls"], layout["n_reg"]
    cls_pad, out_pad = layout["cls_pad"], layout["out_pad"]

    N = x_nchw.shape[0]
    D = x_nchw.shape[1] * x_nchw.shape[2] * x_nchw.shape[3]
    assert w_fused.shape == (D, out_pad)
    if compute_dtype is None:
        compute_dtype = w_fused.dtype

    # Same flattening as torch x.view(N, -1); the (optional bf16) cast fuses into
    # this single pass over x rather than being a separate elementwise HBM pass.
    x_flat = x_nchw.reshape(N, D).astype(compute_dtype)

    # Tiny-N calls: fixed pallas_call / pipeline cost dominates, let XLA fuse a dot.
    if N < min_kernel_rois:
        fused = jnp.dot(x_flat, w_fused, preferred_element_type=jnp.float32) + b_fused
        return fused[:, :n_cls], fused[:, cls_pad:cls_pad + n_reg]

    x_isz = jnp.dtype(compute_dtype).itemsize
    w_isz = jnp.dtype(w_fused.dtype).itemsize
    vmem_cap = _vmem_capacity_bytes()
    budget = int(vmem_cap * 0.85)          # headroom for Mosaic scratch / semaphores

    # Row tile: multiple of 8 sublanes; prefer >= 2 row tiles so the "parallel"
    # grid axis can shard across v7x's 2 TensorCores.
    if tile_n is None:
        tile_n = 256
    tile_n = _round_up(min(tile_n, _round_up(N, 8)), 8)
    if N > 128 and pl.cdiv(N, tile_n) < 2:
        tile_n = max(128, _round_up(pl.cdiv(N, 2), 8))

    def _needed(tn):
        return (D * out_pad * w_isz          # fused weights: single buffer (Buffered(1))
                + out_pad * 4                # fused bias:    single buffer (Buffered(1))
                + 2 * tn * D * x_isz         # double-buffered x row tiles
                + 2 * tn * out_pad * 4)      # double-buffered f32 output slabs

    # Shrink the row tile if the working set would overshoot VMEM (large D configs).
    while tile_n > 8 and _needed(tile_n) > budget:
        tile_n = max(8, _round_up(tile_n // 2, 8))

    vmem_limit = int(min(max(_needed(tile_n) * 1.25 + (2 << 20), 32 << 20), budget))

    grid = (pl.cdiv(N, tile_n),)             # ragged last row tile handled by Pallas

    cost = pl.CostEstimate(
        flops=2 * N * D * out_pad,
        transcendentals=0,
        bytes_accessed=(N * D * x_isz + D * out_pad * w_isz
                        + out_pad * 4 + N * out_pad * 4),
    )

    fused = pl.pallas_call(
        fused_bbox_head_kernel,
        out_shape=jax.ShapeDtypeStruct((N, out_pad), jnp.float32),
        grid_spec=pltpu.PrefetchScalarGridSpec(
            num_scalar_prefetch=0,
            grid=grid,
            in_specs=[
                # x row tile: streamed / double-buffered.
                pl.BlockSpec((tile_n, D), lambda i: (i, 0)),
                # fused weights: constant index_map -> resident; single buffer.
                pl.BlockSpec((D, out_pad), lambda i: (0, 0),
                             pipeline_mode=pl.Buffered(1)),
                # fused bias: resident; single buffer.
                pl.BlockSpec((1, out_pad), lambda i: (0, 0),
                             pipeline_mode=pl.Buffered(1)),
            ],
            out_specs=pl.BlockSpec((tile_n, out_pad), lambda i: (i, 0)),
        ),
        compiler_params=pltpu.CompilerParams(
            dimension_semantics=("parallel",),   # shard row tiles across TCs (v7x)
            vmem_limit_bytes=vmem_limit,
        ),
        cost_estimate=cost,
    )(x_flat, w_fused, b_fused)

    # Lane-aligned splits of the fused, lane-dense output slab.
    cls_score = fused[:, :n_cls]
    bbox_pred = fused[:, cls_pad:cls_pad + n_reg]
    return cls_score, bbox_pred


if __name__ == "__main__":
    # Scaled-down BBoxHead config:
    #   with_avg_pool=False, roi_feat_size=4, in_channels=8, num_classes=4
    #   -> fc in_features D = 8 * 4 * 4 = 128
    #   -> fc_cls: 128 -> 5,  fc_reg: 128 -> 16 (reg_class_agnostic=False)
    num_rois = 200            # >1 row tile (exercises ragged last tile + TC sharding)
    in_channels = 8
    roi_feat_size = 4
    num_classes = 4
    D = in_channels * roi_feat_size * roi_feat_size

    key = jax.random.PRNGKey(0)
    kx, kwc, kwr = jax.random.split(key, 3)

    x = jax.random.normal(
        kx, (num_rois, in_channels, roi_feat_size, roi_feat_size), dtype=jnp.float32)

    # Deterministic init mirroring BBoxHead.init_weights():
    #   fc_cls.weight ~ N(0, 0.01), bias = 0 ; fc_reg.weight ~ N(0, 0.001), bias = 0
    wc = 0.01 * jax.random.normal(kwc, (num_classes + 1, D), dtype=jnp.float32)
    bc = jnp.zeros((num_classes + 1,), dtype=jnp.float32)
    wr = 0.001 * jax.random.normal(kwr, (4 * num_classes, D), dtype=jnp.float32)
    br = jnp.zeros((4 * num_classes,), dtype=jnp.float32)

    # Reference (plain-JAX nn.Linear math).
    x_flat = x.reshape(num_rois, D)
    cls_ref = x_flat @ wc.T + bc
    reg_ref = x_flat @ wr.T + br

    # ---- f32 operand path (tight tolerance) ----
    w32, b32, lay32 = prepare_bbox_head_params(wc, bc, wr, br, compute_dtype=jnp.float32)
    cls32, reg32 = bbox_head_forward(x, w32, b32, lay32)
    jax.block_until_ready((cls32, reg32))
    assert cls32.shape == (num_rois, num_classes + 1)
    assert reg32.shape == (num_rois, 4 * num_classes)
    assert jnp.allclose(cls32, cls_ref, atol=1e-5, rtol=1e-5)
    assert jnp.allclose(reg32, reg_ref, atol=1e-5, rtol=1e-5)

    # ---- bf16 operand path (recommended on v6e/v7x; f32 accumulation + f32 epilogue) ----
    wbf, bbf, laybf = prepare_bbox_head_params(wc, bc, wr, br, compute_dtype=jnp.bfloat16)
    clsbf, regbf = bbox_head_forward(x, wbf, bbf, laybf)
    jax.block_until_ready((clsbf, regbf))
    assert jnp.allclose(clsbf, cls_ref, atol=2e-2, rtol=2e-2)
    assert jnp.allclose(regbf, reg_ref, atol=2e-2, rtol=2e-2)

    print("KERNEL_OK")
</pallas_src>

<mosaic_0001>
module attributes {stable_mosaic.version = 11 : i64} {
  func.func @fused_bbox_head_kernel(%arg0: i32, %arg1: memref<128x128xf32, #tpu.memory_space<vmem>>, %arg2: memref<128x256xf32, #tpu.memory_space<vmem>>, %arg3: memref<1x256xf32, #tpu.memory_space<vmem>>, %arg4: memref<128x256xf32, #tpu.memory_space<vmem>>) attributes {dimension_semantics = [#tpu.dimension_semantics<parallel>], iteration_bounds = array<i64: 2>, scalar_prefetch = 0 : i64, scratch_operands = 0 : i64, tpu.core_type = #tpu.core_type<tc>, window_params = [{transform_indices = @transform_0, window_bounds = array<i64: 128, 128>}, {pipeline_mode = #tpu.pipeline_mode<synchronous>, transform_indices = @transform_1, window_bounds = array<i64: 128, 256>}, {pipeline_mode = #tpu.pipeline_mode<synchronous>, transform_indices = @transform_2, window_bounds = array<i64: 1, 256>}, {transform_indices = @transform_3, window_bounds = array<i64: 128, 256>}]} {
    %c0 = arith.constant 0 : index
    %c0_0 = arith.constant 0 : index
    %0 = vector.load %arg1[%c0, %c0_0] : memref<128x128xf32, #tpu.memory_space<vmem>>, vector<128x128xf32>
    %c0_1 = arith.constant 0 : index
    %c0_2 = arith.constant 0 : index
    %1 = vector.load %arg2[%c0_1, %c0_2] : memref<128x256xf32, #tpu.memory_space<vmem>>, vector<128x256xf32>
    %cst = arith.constant dense<0.000000e+00> : vector<128x256xf32>
    %2 = tpu.matmul %0, %1, %cst {dimension_numbers = #tpu.dot_dimension_numbers<[1], [0], [0], [1], [0, 0, 1, 1], [], []>} : vector<128x128xf32>, vector<128x256xf32>, vector<128x256xf32> -> vector<128x256xf32>
    %c0_3 = arith.constant 0 : index
    %c0_4 = arith.constant 0 : index
    %3 = vector.load %arg3[%c0_3, %c0_4] : memref<1x256xf32, #tpu.memory_space<vmem>>, vector<1x256xf32>
    %4 = vector.broadcast %3 : vector<1x256xf32> to vector<128x256xf32>
    %5 = arith.addf %2, %4 : vector<128x256xf32>
    %c0_5 = arith.constant 0 : index
    %c0_6 = arith.constant 0 : index
    %6 = vector.load %arg4[%c0_5, %c0_6] : memref<128x256xf32, #tpu.memory_space<vmem>>, vector<128x256xf32>
    tpu.vector_store %arg4[%c0_5, %c0_6], %5 {strides = array<i32>} : memref<128x256xf32, #tpu.memory_space<vmem>>, vector<128x256xf32>,
    return
  }
  func.func @transform_0(%arg0: i32) -> (i32, i32) {
    %c0_i32 = arith.constant 0 : i32
    %c0_i32_0 = arith.constant 0 : i32
    return %arg0, %c0_i32 : i32, i32
  }
  func.func @transform_1(%arg0: i32) -> (i32, i32) {
    %c0_i32 = arith.constant 0 : i32
    %c0_i32_0 = arith.constant 0 : i32
    %c0_i32_1 = arith.constant 0 : i32
    return %c0_i32, %c0_i32_0 : i32, i32
  }
  func.func @transform_2(%arg0: i32) -> (i32, i32) {
    %c0_i32 = arith.constant 0 : i32
    %c0_i32_0 = arith.constant 0 : i32
    %c0_i32_1 = arith.constant 0 : i32
    return %c0_i32, %c0_i32_0 : i32, i32
  }
  func.func @transform_3(%arg0: i32) -> (i32, i32) {
    %c0_i32 = arith.constant 0 : i32
    %c0_i32_0 = arith.constant 0 : i32
    return %arg0, %c0_i32 : i32, i32
  }
}

</mosaic_0001>

<llo_original>
// kernel: tpu_custom_call.1
$region0: #{tpu_custom_call.1}
  #allocation0 [shape = 'u32[]', space=smem, size = 0x4, offset = 0x4, fixed_abs, tag = 'smem constant byte address 0x4 - core index']
  #allocation1 [shape = 'u32[144,128]{1,0:T(1,128)}', space=vmem, size = 0x12000, scoped, tag = 'internal scratch']
  %s0 = inlined_call_operand.hbm [shape: f32[200,128], index: 0, kind: input, shape index: {}]
  %s1 = inlined_call_operand.hbm [shape: f32[128,256], index: 1, kind: input, shape index: {}]
  %s2 = inlined_call_operand.vmem [shape: f32[1,256], index: 2, kind: input, shape index: {}]
  %s3 = inlined_call_operand.hbm [shape: f32[200,256], index: 3, kind: output, shape index: {}]
  %s4 = sld [smem:[#allocation0]]
  $region53: #{tpu_custom_call.1} parent=0
    _
  %s6 = ssub.s32 1, %s4
  %s7 = scalar_select 0, %s6, %s4
  $region1: #{tpu_custom_call.1} parent=0
    #allocation2 [shape = 'u8[131072]{0}', space=vmem, size = 0x20000, scoped, tag = 'input window, operand 0']
    #allocation3 [shape = 's32[2]{0}', space=sflag, size = 0x8, scoped, tag = 'scoped memory for tpu_custom_call.1']
    #allocation4 [shape = 's32[2]{0}', space=sflag, size = 0x8, scoped, tag = 'scoped memory for tpu_custom_call.1']
    #allocation5 [shape = 'u8[131072]{0}', space=vmem, size = 0x20000, scoped, tag = 'input window, operand 1, single buffered']
    #allocation6 [shape = 's32[1]{0}', space=sflag, size = 0x4, scoped, tag = 'scoped memory for tpu_custom_call.1']
    #allocation7 [shape = 'u8[262144]{0}', space=vmem, size = 0x40000, scoped, tag = 'output window, operand 0']
    %8 = vsyncpa [#allocation3], 0
    %s9 = scalar_lea.sflag [#allocation3], 1
    %10 = vsyncpa %s9, 0
    %11 = vsyncpa [#allocation6], 0
    %12 = vsyncpa [#allocation4], 0
    %s13 = scalar_lea.sflag [#allocation4], 1
    %14 = vsyncpa %s13, 0
    loop: start=0, step=1, limit=4
    $region2: #{tpu_custom_call.1} parent=1 // loop_pre_header
      _
    $region3: #{tpu_custom_call.1} parent=1 // loop_header
      %s16 = sphi 0, %s20
      %p17 = scmp.ge.s32.totalorder %s16, 4
      %s26 = sphi 0, %s28
      %s29 = sphi 0, %s26
      %s30 = sphi 0, %s29
      %s46 = sphi 0, %s30
      %s50 = sphi 0, %s50
      %s52 = sphi 0, %s50
      %s53 = sphi 0, %s52
      %s67 = sphi 0, %s53
      %s71 = sphi 0, %s71
      %s73 = sphi 0, %s71
      %s74 = sphi 0, %s73
      %s88 = sphi 0, %s74
      %s94 = sphi 0, %s96
      %s97 = sphi 0, %s94
      %s98 = sphi 0, %s97
      %s114 = sphi 0, %s98
    $region4: #{tpu_custom_call.1} parent=1 // loop_header_branch
      %19 = sbr.rel (%p17) target = $region8
    $region5: #{tpu_custom_call.1} parent=1 // loop_body
      %s21 = ssub.s32 %s16, 1
      %s22 = ssub.s32 %s16, 2
      %s23 = sadd.s32 %s16, 1
      %s24 = ssub.s32 %s16, %s23
      %p25 = scmp.eq.s32.totalorder %s24, 0
      %s27 = sadd.s32 %s26, 1
      %s28 = scalar_select %p25, %s26, %s27
      %p31 = pneg %p25
      %p32 = scmp.eq.s32.totalorder %s16, 1
      %p33 = por %p31, %p32
      %p34 = scmp.ne.s32.totalorder %s26, %s29
      %p35 = scmp.eq.s32.totalorder %s16, 0
      %p36 = por %p34, %p35
      %p37 = scmp.ne.s32.totalorder %s26, %s29
      %p38 = scmp.eq.s32.totalorder %s21, 1
      %p39 = por %p37, %p38
      %p40 = scmp.ne.s32.totalorder %s29, %s30
      %p41 = scmp.eq.s32.totalorder %s21, 0
      %p42 = por %p40, %p41
      %p43 = scmp.ne.s32.totalorder %s29, %s30
      %p44 = scmp.eq.s32.totalorder %s22, 1
      %p45 = por %p43, %p44
      %p47 = scmp.ne.s32.totalorder %s30, %s46
      %p48 = scmp.eq.s32.totalorder %s22, 0
      %p49 = por %p47, %p48
      %s51 = sadd.s32 %s50, 1
      %p54 = scmp.eq.s32.totalorder %s16, 1
      %p55 = scmp.ne.s32.totalorder %s50, %s52
      %p56 = scmp.eq.s32.totalorder %s16, 0
      %p57 = por %p55, %p56
      %p58 = scmp.ne.s32.totalorder %s50, %s52
      %p59 = scmp.eq.s32.totalorder %s21, 1
      %p60 = por %p58, %p59
      %p61 = scmp.ne.s32.totalorder %s52, %s53
      %p62 = scmp.eq.s32.totalorder %s21, 0
      %p63 = por %p61, %p62
      %p64 = scmp.ne.s32.totalorder %s52, %s53
      %p65 = scmp.eq.s32.totalorder %s22, 1
      %p66 = por %p64, %p65
      %p68 = scmp.ne.s32.totalorder %s53, %s67
      %p69 = scmp.eq.s32.totalorder %s22, 0
      %p70 = por %p68, %p69
      %s72 = sadd.s32 %s71, 1
      %p75 = scmp.eq.s32.totalorder %s16, 1
      %p76 = scmp.ne.s32.totalorder %s71, %s73
      %p77 = scmp.eq.s32.totalorder %s16, 0
      %p78 = por %p76, %p77
      %p79 = scmp.ne.s32.totalorder %s71, %s73
      %p80 = scmp.eq.s32.totalorder %s21, 1
      %p81 = por %p79, %p80
      %p82 = scmp.ne.s32.totalorder %s73, %s74
      %p83 = scmp.eq.s32.totalorder %s21, 0
      %p84 = por %p82, %p83
      %p85 = scmp.ne.s32.totalorder %s73, %s74
      %p86 = scmp.eq.s32.totalorder %s22, 1
      %p87 = por %p85, %p86
      %p89 = scmp.ne.s32.totalorder %s74, %s88
      %p90 = scmp.eq.s32.totalorder %s22, 0
      %p91 = por %p89, %p90
      %s92 = ssub.s32 %s16, %s23
      %p93 = scmp.eq.s32.totalorder %s92, 0
      %s95 = sadd.s32 %s94, 1
      %s96 = scalar_select %p93, %s94, %s95
      %p99 = pneg %p93
      %p100 = scmp.eq.s32.totalorder %s16, 1
      %p101 = por %p99, %p100
      %p102 = scmp.ne.s32.totalorder %s94, %s97
      %p103 = scmp.eq.s32.totalorder %s16, 0
      %p104 = por %p102, %p103
      %p105 = scmp.ne.s32.totalorder %s94, %s97
      %p106 = scmp.eq.s32.totalorder %s21, 1
      %p107 = por %p105, %p106
      %p108 = scmp.ne.s32.totalorder %s97, %s98
      %p109 = scmp.eq.s32.totalorder %s21, 0
      %p110 = por %p108, %p109
      %p111 = scmp.ne.s32.totalorder %s97, %s98
      %p112 = scmp.eq.s32.totalorder %s22, 1
      %p113 = por %p111, %p112
      %p115 = scmp.ne.s32.totalorder %s98, %s114
      %p116 = scmp.eq.s32.totalorder %s22, 0
      %p117 = por %p115, %p116
      %p118 = scmp.le.s32.totalorder 1, %s16
      %p119 = scmp.lt.s32.totalorder %s16, 3
      %p120 = pnand %p118, %p119
      %p121 = pneg %p120
      // Predicated region
      $region9: #{tpu_custom_call.1} parent=5 // pred_check
        _
      $region10: #{tpu_custom_call.1} parent=5 // pred_check_branch
        %123 = sbr.rel (%p120) target = $region12
      $region11: #{tpu_custom_call.1} parent=5 // pred_region
        %s124 = ssub.s32 %s16, 1
        // Predicated region
        $region13: #{tpu_custom_call.1} parent=11 // pred_check
          %p125 = pneg %p63
        $region14: #{tpu_custom_call.1} parent=11 // pred_check_branch
          %127 = sbr.rel (%p125) target = $region16
        $region15: #{tpu_custom_call.1} parent=11 // pred_region
          %s129 = ssub.s32 4096, 4096
          %130 = vsyncadd [#allocation6], %s129
          %s131 = sshll.u32 [#allocation5], 4
          %s132 = int_to_ptr.vmem [resolvable:$true] %s131
          %137 = dma.hbm_to_vmem [thread:$0]  %s1, 4096, %s132, [#allocation6], 256, 256, 16
        $region16: #{tpu_custom_call.1} parent=11 // pred_fallthru
          _
        // Predicated region
        $region17: #{tpu_custom_call.1} parent=11 // pred_check
          %p138 = pneg %p84
        $region18: #{tpu_custom_call.1} parent=11 // pred_check_branch
          %140 = sbr.rel (%p138) target = $region20
        $region19: #{tpu_custom_call.1} parent=11 // pred_region
          _
        $region20: #{tpu_custom_call.1} parent=11 // pred_fallthru
          _
      $region12: #{tpu_custom_call.1} parent=5 // pred_fallthru
        _
      %p141 = scmp.lt.s32.totalorder %s16, 2
      // Predicated region
      $region21: #{tpu_custom_call.1} parent=5 // pred_check
        %p142 = pneg %p141
      $region22: #{tpu_custom_call.1} parent=5 // pred_check_branch
        %144 = sbr.rel (%p142) target = $region24
      $region23: #{tpu_custom_call.1} parent=5 // pred_region
        // Predicated region
        $region25: #{tpu_custom_call.1} parent=23 // pred_check
          %p145 = pneg %p36
        $region26: #{tpu_custom_call.1} parent=23 // pred_check_branch
          %147 = sbr.rel (%p145) target = $region28
        $region27: #{tpu_custom_call.1} parent=23 // pred_region
          %s148 = sand.u32 %s26, 1
          %s149 = scalar_lea.sflag [#allocation3], %s148
          %s150 = sand.u32 %s26, 1
          %s151 = smul.addr %s150, 128
          %s152 = scalar_lea.vmem [#allocation2], %s151
          %s153 = smul.u32 16, %s16
          %s154 = ssub.s32 25, %s153
          %p155 = scmp.lt.s32.totalorder %s154, 16
          %s156 = scalar_select %p155, %s154, 16
          %s157 = smul.u32 128, %s156
          %s159 = ssub.s32 2048, %s157
          %160 = vsyncadd %s149, %s159
          %p161 = scmp.ne.s32.totalorder 0, %s157
          %s162 = smul.addr %s153, 128
          %s163 = scalar_lea.hbm %s0, %s162
          %s164 = smul.u32 8, %s156
          %s165 = sshll.u32 %s152, 4
          %s166 = int_to_ptr.vmem [resolvable:$true] %s165
          %s167 = sshll.u32 %s164, 4
          %171 = dma.hbm_to_vmem [thread:$0]  (%p161), %s163, %s167, %s166, %s149, 128, 128, 8
        $region28: #{tpu_custom_call.1} parent=23 // pred_fallthru
          _
      $region24: #{tpu_custom_call.1} parent=5 // pred_fallthru
        _
      %p172 = scmp.le.s32.totalorder 1, %s16
      %p173 = scmp.lt.s32.totalorder %s16, 3
      %p174 = pnand %p172, %p173
      %p175 = pneg %p174
      // Predicated region
      $region29: #{tpu_custom_call.1} parent=5 // pred_check
        _
      $region30: #{tpu_custom_call.1} parent=5 // pred_check_branch
        %177 = sbr.rel (%p174) target = $region32
      $region31: #{tpu_custom_call.1} parent=5 // pred_region
        %s178 = ssub.s32 %s16, 1
        %s179 = sand.u32 %s29, 1
        %s180 = scalar_lea.sflag [#allocation3], %s179
        %s181 = sand.u32 %s29, 1
        %s182 = smul.addr %s181, 128
        %s183 = scalar_lea.vmem [#allocation2], %s182
        // Predicated region
        $region33: #{tpu_custom_call.1} parent=31 // pred_check
          %p184 = pneg %p42
        $region34: #{tpu_custom_call.1} parent=31 // pred_check_branch
          %186 = sbr.rel (%p184) target = $region36
        $region35: #{tpu_custom_call.1} parent=31 // pred_region
          %187 = dma.done %s180, 2048
        $region36: #{tpu_custom_call.1} parent=31 // pred_fallthru
          _
        // Predicated region
        $region37: #{tpu_custom_call.1} parent=31 // pred_check
          %p188 = pneg %p63
        $region38: #{tpu_custom_call.1} parent=31 // pred_check_branch
          %190 = sbr.rel (%p188) target = $region40
        $region39: #{tpu_custom_call.1} parent=31 // pred_region
          %191 = dma.done [#allocation6], 4096
        $region40: #{tpu_custom_call.1} parent=31 // pred_fallthru
          _
        %s192 = sand.u32 %s29, 1
        %s193 = scalar_lea.sflag [#allocation3], %s192
        %s194 = sand.u32 %s29, 1
        %s195 = smul.addr %s194, 128
        %s196 = scalar_lea.vmem [#allocation2], %s195
        %p197 = pneg %p42
        %p198 = pneg %p39
        %p199 = pneg %p63
        %p200 = pneg %p60
        %p201 = pneg %p84
        %p202 = pneg %p81
        %p203 = pneg %p110
        %p204 = pneg %p107
        %s205 = sand.u32 %s97, 1
        %s206 = scalar_lea.sflag [#allocation4], %s205
        %s207 = sand.u32 %s97, 1
        %s208 = smul.addr %s207, 256
        %s209 = scalar_lea.vmem [#allocation7], %s208
        %s210 = smul.u32 16, %s21
        %s211 = ssub.s32 25, %s210
        %p212 = scmp.lt.s32.totalorder %s211, 16
        %s213 = scalar_select %p212, %s211, 16
        %s214 = smul.u32 128, %s213
        %s215 = smul.u32 16, %s21
        %s216 = ssub.s32 25, %s215
        %p217 = scmp.lt.s32.totalorder %s216, 16
        %s218 = scalar_select %p217, %s216, 16
        %s219 = smul.u32 128, %s218
        %s220 = smul.u32 %s219, 2
        %v221 = vld [vmem:[%s183] sm:$0xff]
        %v222 = vld [vmem:[%s183 + $0x8] sm:$0xff]
        %v223 = vld [vmem:[%s183 + $0x10] sm:$0xff]
        %v224 = vld [vmem:[%s183 + $0x18] sm:$0xff]
        %v225 = vld [vmem:[%s183 + $0x20] sm:$0xff]
        %v226 = vld [vmem:[%s183 + $0x28] sm:$0xff]
        %v227 = vld [vmem:[%s183 + $0x30] sm:$0xff]
        %v228 = vld [vmem:[%s183 + $0x38] sm:$0xff]
        %v229 = vld [vmem:[%s183 + $0x40] sm:$0xff]
        %v230 = vld [vmem:[%s183 + $0x48] sm:$0xff]
        %v231 = vld [vmem:[%s183 + $0x50] sm:$0xff]
        %v232 = vld [vmem:[%s183 + $0x58] sm:$0xff]
        %v233 = vld [vmem:[%s183 + $0x60] sm:$0xff]
        %v234 = vld [vmem:[%s183 + $0x68] sm:$0xff]
        %v235 = vld [vmem:[%s183 + $0x70] sm:$0xff]
        %v236 = vld [vmem:[%s183 + $0x78] sm:$0xff]
        %v237 = vld [vmem:[#allocation5] sm:$0xff]
        %v238 = vld [vmem:[#allocation5 + $0x8] sm:$0xff]
        %v239 = vld [vmem:[#allocation5 + $0x10] sm:$0xff]
        %v240 = vld [vmem:[#allocation5 + $0x18] sm:$0xff]
        %v241 = vld [vmem:[#allocation5 + $0x20] sm:$0xff]
        %v242 = vld [vmem:[#allocation5 + $0x28] sm:$0xff]
        %v243 = vld [vmem:[#allocation5 + $0x30] sm:$0xff]
        %v244 = vld [vmem:[#allocation5 + $0x38] sm:$0xff]
        %v245 = vld [vmem:[#allocation5 + $0x40] sm:$0xff]
        %v246 = vld [vmem:[#allocation5 + $0x48] sm:$0xff]
        %v247 = vld [vmem:[#allocation5 + $0x50] sm:$0xff]
        %v248 = vld [vmem:[#allocation5 + $0x58] sm:$0xff]
        %v249 = vld [vmem:[#allocation5 + $0x60] sm:$0xff]
        %v250 = vld [vmem:[#allocation5 + $0x68] sm:$0xff]
        %v251 = vld [vmem:[#allocation5 + $0x70] sm:$0xff]
        %v252 = vld [vmem:[#allocation5 + $0x78] sm:$0xff]
        %v253 = vld [vmem:[#allocation5 + $0x80] sm:$0xff]
        %v254 = vld [vmem:[#allocation5 + $0x88] sm:$0xff]
        %v255 = vld [vmem:[#allocation5 + $0x90] sm:$0xff]
        %v256 = vld [vmem:[#allocation5 + $0x98] sm:$0xff]
        %v257 = vld [vmem:[#allocation5 + $0xa0] sm:$0xff]
        %v258 = vld [vmem:[#allocation5 + $0xa8] sm:$0xff]
        %v259 = vld [vmem:[#allocation5 + $0xb0] sm:$0xff]
        %v260 = vld [vmem:[#allocation5 + $0xb8] sm:$0xff]
        %v261 = vld [vmem:[#allocation5 + $0xc0] sm:$0xff]
        %v262 = vld [vmem:[#allocation5 + $0xc8] sm:$0xff]
        %v263 = vld [vmem:[#allocation5 + $0xd0] sm:$0xff]
        %v264 = vld [vmem:[#allocation5 + $0xd8] sm:$0xff]
        %v265 = vld [vmem:[#allocation5 + $0xe0] sm:$0xff]
        %v266 = vld [vmem:[#allocation5 + $0xe8] sm:$0xff]
        %v267 = vld [vmem:[#allocation5 + $0xf0] sm:$0xff]
        %v268 = vld [vmem:[#allocation5 + $0xf8] sm:$0xff]
        %v269 = vld [vmem:[%s2] sm:$0x3]
        %v271 = vlaneseq
        %v272 = vshrl.u32 %v271, 7
        %v273 = vsub.s32 0, %v272
        %v274 = vrot.slane %v269, %v273
        %v275 = vlaneseq
        %v276 = vshrl.u32 %v275, 7
        %v277 = vsub.s32 1, %v276
        %v278 = vrot.slane %v269, %v277
        %281 = vmatprep.subr.mxu0 %v268
        %282 = vmatpush1.msra.mxu0 %v267
        %283 = vmatprep.subr.mxu0 %v266
        %284 = vmatpush1.msra.mxu0 %v265
        %285 = vmatprep.subr.mxu0 %v264
        %286 = vmatpush1.msra.mxu0 %v263
        %287 = vmatprep.subr.mxu0 %v262
        %288 = vmatpush1.msra.mxu0 %v261
        %289 = vmatprep.subr.mxu0 %v260
        %290 = vmatpush1.msra.mxu0 %v259
        %291 = vmatprep.subr.mxu0 %v258
        %292 = vmatpush1.msra.mxu0 %v257
        %293 = vmatprep.subr.mxu0 %v256
        %294 = vmatpush1.msra.mxu0 %v255
        %295 = vmatprep.subr.mxu0 %v254
        %296 = vmatpush1.msra.mxu0 %v253
        %297 = vmatprep.subr.mxu0 %v252
        %298 = vmatpush1.msra.mxu0 %v251
        %299 = vmatprep.subr.mxu0 %v250
        %300 = vmatpush1.msra.mxu0 %v249
        %301 = vmatprep.subr.mxu0 %v248
        %302 = vmatpush1.msra.mxu0 %v247
        %303 = vmatprep.subr.mxu0 %v246
        %304 = vmatpush1.msra.mxu0 %v245
        %305 = vmatprep.subr.mxu0 %v244
        %306 = vmatpush1.msra.mxu0 %v243
        %307 = vmatprep.subr.mxu0 %v242
        %308 = vmatpush1.msra.mxu0 %v241
        %309 = vmatprep.subr.mxu0 %v240
        %310 = vmatpush1.msra.mxu0 %v239
        %311 = vmatprep.subr.mxu0 %v238
        %312 = vmatpush1.msra.mxu0 %v237
        %313 = vmatprep.subr.mxu0 0.0
        %314 = vmatpush2.msra.mxu0 0.0
        %315 = vmatprep.subr.mxu0 0.0
        %316 = vmatpush2.msra.mxu0 0.0
        %317 = vmatprep.subr.mxu0 0.0
        %318 = vmatpush2.msra.mxu0 0.0
        %319 = vmatprep.subr.mxu0 0.0
        %320 = vmatpush2.msra.mxu0 0.0
        %321 = vmatprep.subr.mxu0 0.0
        %322 = vmatpush2.msra.mxu0 0.0
        %323 = vmatprep.subr.mxu0 0.0
        %324 = vmatpush2.msra.mxu0 0.0
        %325 = vmatprep.subr.mxu0 0.0
        %326 = vmatpush2.msra.mxu0 0.0
        %327 = vmatprep.subr.mxu0 0.0
        %328 = vmatpush2.msra.mxu0 0.0
        %329 = vmatprep.subr.mxu0 0.0
        %330 = vmatpush2.msra.mxu0 0.0
        %331 = vmatprep.subr.mxu0 0.0
        %332 = vmatpush2.msra.mxu0 0.0
        %333 = vmatprep.subr.mxu0 0.0
        %334 = vmatpush2.msra.mxu0 0.0
        %335 = vmatprep.subr.mxu0 0.0
        %336 = vmatpush2.msra.mxu0 0.0
        %337 = vmatprep.subr.mxu0 0.0
        %338 = vmatpush2.msra.mxu0 0.0
        %339 = vmatprep.subr.mxu0 0.0
        %340 = vmatpush2.msra.mxu0 0.0
        %341 = vmatprep.subr.mxu0 0.0
        %342 = vmatpush2.msra.mxu0 0.0
        %343 = vmatprep.subr.mxu0 0.0
        %344 = vmatpush2.msra.mxu0 0.0
        %345 = vmatprep.mubr.f32.mxu0 0.0
        %346 = vmatmul.mubr.f32.gmra.mxu0 %v221
        %v347 = vpop.f32.mrf.mxu0
        %v348 = vadd.f32 %v274, %v347
        %v349 = vpop.f32.mrf.mxu0
        %v350 = vadd.f32 %v278, %v349
        %351 = vmatprep.mubr.f32.mxu0 0.0
        %352 = vmatmul.mubr.f32.gmra.mxu0 %v222
        %v353 = vpop.f32.mrf.mxu0
        %v354 = vadd.f32 %v274, %v353
        %v355 = vpop.f32.mrf.mxu0
        %v356 = vadd.f32 %v278, %v355
        %357 = vmatprep.mubr.f32.mxu0 0.0
        %358 = vmatmul.mubr.f32.gmra.mxu0 %v223
        %v359 = vpop.f32.mrf.mxu0
        %v360 = vadd.f32 %v274, %v359
        %v361 = vpop.f32.mrf.mxu0
        %v362 = vadd.f32 %v278, %v361
        %363 = vmatprep.mubr.f32.mxu0 0.0
        %364 = vmatmul.mubr.f32.gmra.mxu0 %v224
        %v365 = vpop.f32.mrf.mxu0
        %v366 = vadd.f32 %v274, %v365
        %v367 = vpop.f32.mrf.mxu0
        %v368 = vadd.f32 %v278, %v367
        %369 = vmatprep.mubr.f32.mxu0 0.0
        %370 = vmatmul.mubr.f32.gmra.mxu0 %v225
        %v371 = vpop.f32.mrf.mxu0
        %v372 = vadd.f32 %v274, %v371
        %v373 = vpop.f32.mrf.mxu0
        %v374 = vadd.f32 %v278, %v373
        %375 = vmatprep.mubr.f32.mxu0 0.0
        %376 = vmatmul.mubr.f32.gmra.mxu0 %v226
        %v377 = vpop.f32.mrf.mxu0
        %v378 = vadd.f32 %v274, %v377
        %v379 = vpop.f32.mrf.mxu0
        %v380 = vadd.f32 %v278, %v379
        %381 = vmatprep.mubr.f32.mxu0 0.0
        %382 = vmatmul.mubr.f32.gmra.mxu0 %v227
        %v383 = vpop.f32.mrf.mxu0
        %v384 = vadd.f32 %v274, %v383
        %v385 = vpop.f32.mrf.mxu0
        %v386 = vadd.f32 %v278, %v385
        %387 = vmatprep.mubr.f32.mxu0 0.0
        %388 = vmatmul.mubr.f32.gmra.mxu0 %v228
        %v389 = vpop.f32.mrf.mxu0
        %v390 = vadd.f32 %v274, %v389
        %v391 = vpop.f32.mrf.mxu0
        %v392 = vadd.f32 %v278, %v391
        %393 = vmatprep.mubr.f32.mxu0 0.0
        %394 = vmatmul.mubr.f32.gmra.mxu0 %v229
        %v395 = vpop.f32.mrf.mxu0
        %v396 = vadd.f32 %v274, %v395
        %v397 = vpop.f32.mrf.mxu0
        %v398 = vadd.f32 %v278, %v397
        %399 = vmatprep.mubr.f32.mxu0 0.0
        %400 = vmatmul.mubr.f32.gmra.mxu0 %v230
        %v401 = vpop.f32.mrf.mxu0
        %v402 = vadd.f32 %v274, %v401
        %v403 = vpop.f32.mrf.mxu0
        %v404 = vadd.f32 %v278, %v403
        %405 = vmatprep.mubr.f32.mxu0 0.0
        %406 = vmatmul.mubr.f32.gmra.mxu0 %v231
        %v407 = vpop.f32.mrf.mxu0
        %v408 = vadd.f32 %v274, %v407
        %v409 = vpop.f32.mrf.mxu0
        %v410 = vadd.f32 %v278, %v409
        %411 = vmatprep.mubr.f32.mxu0 0.0
        %412 = vmatmul.mubr.f32.gmra.mxu0 %v232
        %v413 = vpop.f32.mrf.mxu0
        %v414 = vadd.f32 %v274, %v413
        %v415 = vpop.f32.mrf.mxu0
        %v416 = vadd.f32 %v278, %v415
        %417 = vmatprep.mubr.f32.mxu0 0.0
        %418 = vmatmul.mubr.f32.gmra.mxu0 %v233
        %v419 = vpop.f32.mrf.mxu0
        %v420 = vadd.f32 %v274, %v419
        %v421 = vpop.f32.mrf.mxu0
        %v422 = vadd.f32 %v278, %v421
        %423 = vmatprep.mubr.f32.mxu0 0.0
        %424 = vmatmul.mubr.f32.gmra.mxu0 %v234
        %v425 = vpop.f32.mrf.mxu0
        %v426 = vadd.f32 %v274, %v425
        %v427 = vpop.f32.mrf.mxu0
        %v428 = vadd.f32 %v278, %v427
        %429 = vmatprep.mubr.f32.mxu0 0.0
        %430 = vmatmul.mubr.f32.gmra.mxu0 %v235
        %v431 = vpop.f32.mrf.mxu0
        %v432 = vadd.f32 %v274, %v431
        %v433 = vpop.f32.mrf.mxu0
        %v434 = vadd.f32 %v278, %v433
        %435 = vmatprep.mubr.f32.mxu0 0.0
        %436 = vmatmul.mubr.f32.gmra.mxu0 %v236
        %v437 = vpop.f32.mrf.mxu0
        %v438 = vadd.f32 %v274, %v437
        %v439 = vpop.f32.mrf.mxu0
        %v440 = vadd.f32 %v278, %v439
        %441 = vdwg.mxu0
        %442 = vst [vmem:[%s209] sm:$0xff] %v348
        %443 = vst [vmem:[%s209 + $0x8] sm:$0xff] %v350
        %444 = vst [vmem:[%s209 + $0x10] sm:$0xff] %v354
        %445 = vst [vmem:[%s209 + $0x18] sm:$0xff] %v356
        %446 = vst [vmem:[%s209 + $0x20] sm:$0xff] %v360
        %447 = vst [vmem:[%s209 + $0x28] sm:$0xff] %v362
        %448 = vst [vmem:[%s209 + $0x30] sm:$0xff] %v366
        %449 = vst [vmem:[%s209 + $0x38] sm:$0xff] %v368
        %450 = vst [vmem:[%s209 + $0x40] sm:$0xff] %v372
        %451 = vst [vmem:[%s209 + $0x48] sm:$0xff] %v374
        %452 = vst [vmem:[%s209 + $0x50] sm:$0xff] %v378
        %453 = vst [vmem:[%s209 + $0x58] sm:$0xff] %v380
        %454 = vst [vmem:[%s209 + $0x60] sm:$0xff] %v384
        %455 = vst [vmem:[%s209 + $0x68] sm:$0xff] %v386
        %456 = vst [vmem:[%s209 + $0x70] sm:$0xff] %v390
        %457 = vst [vmem:[%s209 + $0x78] sm:$0xff] %v392
        %458 = vst [vmem:[%s209 + $0x80] sm:$0xff] %v396
        %459 = vst [vmem:[%s209 + $0x88] sm:$0xff] %v398
        %460 = vst [vmem:[%s209 + $0x90] sm:$0xff] %v402
        %461 = vst [vmem:[%s209 + $0x98] sm:$0xff] %v404
        %462 = vst [vmem:[%s209 + $0xa0] sm:$0xff] %v408
        %463 = vst [vmem:[%s209 + $0xa8] sm:$0xff] %v410
        %464 = vst [vmem:[%s209 + $0xb0] sm:$0xff] %v414
        %465 = vst [vmem:[%s209 + $0xb8] sm:$0xff] %v416
        %466 = vst [vmem:[%s209 + $0xc0] sm:$0xff] %v420
        %467 = vst [vmem:[%s209 + $0xc8] sm:$0xff] %v422
        %468 = vst [vmem:[%s209 + $0xd0] sm:$0xff] %v426
        %469 = vst [vmem:[%s209 + $0xd8] sm:$0xff] %v428
        %470 = vst [vmem:[%s209 + $0xe0] sm:$0xff] %v432
        %471 = vst [vmem:[%s209 + $0xe8] sm:$0xff] %v434
        %472 = vst [vmem:[%s209 + $0xf0] sm:$0xff] %v438
        %473 = vst [vmem:[%s209 + $0xf8] sm:$0xff] %v440
        %s474 = sand.u32 %s97, 1
        %s475 = scalar_lea.sflag [#allocation4], %s474
        %s476 = sand.u32 %s97, 1
        %s477 = smul.addr %s476, 256
        %s478 = scalar_lea.vmem [#allocation7], %s477
        // Predicated region
        $region41: #{tpu_custom_call.1} parent=31 // pred_check
          %p479 = pneg %p107
        $region42: #{tpu_custom_call.1} parent=31 // pred_check_branch
          %481 = sbr.rel (%p479) target = $region44
        $region43: #{tpu_custom_call.1} parent=31 // pred_region
          %s482 = smul.u32 16, %s21
          %s483 = ssub.s32 25, %s482
          %p484 = scmp.lt.s32.totalorder %s483, 16
          %s485 = scalar_select %p484, %s483, 16
          %s486 = smul.u32 128, %s485
          %s487 = smul.u32 %s486, 2
          %s489 = ssub.s32 4096, %s487
          %490 = vsyncadd %s475, %s489
          %p491 = scmp.ne.s32.totalorder 0, %s487
          %s492 = smul.addr %s482, 2
          %s493 = smul.addr %s492, 128
          %s494 = scalar_lea.hbm %s3, %s493
          %s495 = smul.u32 16, %s485
          %s496 = sshll.u32 %s478, 4
          %s497 = int_to_ptr.vmem [resolvable:$true] %s496
          %s498 = sshll.u32 %s495, 4
          %502 = dma.vmem_to_hbm [thread:$0]  (%p491), %s497, %s498, %s494, %s475, 256, 256, 16
        $region44: #{tpu_custom_call.1} parent=31 // pred_fallthru
          _
      $region32: #{tpu_custom_call.1} parent=5 // pred_fallthru
        _
      %p503 = scmp.le.s32.totalorder 2, %s16
      // Predicated region
      $region45: #{tpu_custom_call.1} parent=5 // pred_check
        %p504 = pneg %p503
      $region46: #{tpu_custom_call.1} parent=5 // pred_check_branch
        %506 = sbr.rel (%p504) target = $region48
      $region47: #{tpu_custom_call.1} parent=5 // pred_region
        %s507 = ssub.s32 %s16, 2
        // Predicated region
        $region49: #{tpu_custom_call.1} parent=47 // pred_check
          %p508 = pneg %p113
        $region50: #{tpu_custom_call.1} parent=47 // pred_check_branch
          %510 = sbr.rel (%p508) target = $region52
        $region51: #{tpu_custom_call.1} parent=47 // pred_region
          %s511 = sand.u32 %s98, 1
          %s512 = scalar_lea.sflag [#allocation4], %s511
          %s513 = sand.u32 %s98, 1
          %s514 = smul.addr %s513, 256
          %s515 = scalar_lea.vmem [#allocation7], %s514
          %516 = dma.done %s512, 4096
        $region52: #{tpu_custom_call.1} parent=47 // pred_fallthru
          _
      $region48: #{tpu_custom_call.1} parent=5 // pred_fallthru
        _
    $region6: #{tpu_custom_call.1} parent=1 // loop_footer
      %s20 = sadd.s32 1, %s16
    $region7: #{tpu_custom_call.1} parent=1 // loop_footer_branch
      %15 = sbr.rel target = $region3
    $region8: #{tpu_custom_call.1} parent=1 // loop_exit
      _
    %517 = vsyncpa [#allocation3], 1
    %s518 = scalar_lea.sflag [#allocation3], 1
    %519 = vsyncpa %s518, 1
    %520 = vsyncpa [#allocation6], 1
    %521 = vsyncpa [#allocation4], 1
    %s522 = scalar_lea.sflag [#allocation4], 1
    %523 = vsyncpa %s522, 1

</llo_original>
